<compile_context>
chip_gen: v6e
topology: v6e:2x2x1
jax: 0.10.0
libtpu: 0.0.40
codegen_flags: <defaults>
</compile_context>

<pallas_src>
import jax
import jax.numpy as jnp
from jax.experimental import pallas as pl
from jax.experimental.pallas import tpu as pltpu


def _round_up(x, m):
    return (x + m - 1) // m * m


def _pick_tile(dim, max_tile, align):
    """Largest aligned tile <= max_tile, preferring one that avoids padding."""
    dim_p = _round_up(dim, align)
    if dim_p <= max_tile:
        return dim_p
    start = max_tile - (max_tile % align)
    for t in range(start, align - 1, -align):
        if dim_p % t == 0:
            return t
    return max_tile


def _split_divisor(dim_p, current_tile, align):
    """Largest aligned divisor of dim_p that is <= current_tile // 2 (or None)."""
    upper = (current_tile // 2) // align * align
    for t in range(upper, align - 1, -align):
        if dim_p % t == 0:
            return t
    return None


def _linear_kernel(x_ref, w_ref, b_ref, o_ref):
    """out[i, j] = bias[j] + sum_k x[i, k] @ w[k, j].

    The (tm, tn) f32 output tile's block index (i, j) is invariant along the k
    grid axis, so it stays resident in VMEM and doubles as the accumulator.
    The bias is folded into the k == 0 initialization, which saves the extra
    full read-modify-write pass a separate final bias add would cost.
    """
    k = pl.program_id(2)

    @pl.when(k == 0)
    def _():
        o_ref[...] = jnp.broadcast_to(b_ref[...], o_ref.shape)

    # Weight arrives pre-transposed to (K, N): standard contraction, no
    # in-kernel transpose of the weight tile.
    o_ref[...] += jnp.dot(
        x_ref[...], w_ref[...], preferred_element_type=jnp.float32
    )


def prepare_linear_params(weight, bias, *, param_dtype=jnp.float32):
    """One-time (parameter-load-time) preparation of nn.Linear parameters.

    weight: (N, K) float32  (PyTorch nn.Linear layout)
    bias:   (N,)   float32

    Returns (w_kn, bias2d, n_out):
      w_kn   : (Kp, Np) param_dtype, transposed + padded to 128-multiples
      bias2d : (1, Np)  float32
      n_out  : N (logical output width)
    """
    N, K = weight.shape
    assert bias.shape == (N,)
    Kp, Np = _round_up(K, 128), _round_up(N, 128)
    w_kn = weight.T                              # (K, N), done once
    if (Kp, Np) != (K, N):
        w_kn = jnp.pad(w_kn, ((0, Kp - K), (0, Np - N)))
    w_kn = w_kn.astype(param_dtype)              # optional bf16, done once
    b = bias if Np == N else jnp.pad(bias, (0, Np - N))
    bias2d = b.reshape(1, Np).astype(jnp.float32)
    return w_kn, bias2d, N


def mlp_forward(x, w_kn, bias2d, n_out, *, tm=None, tn=None, tk=None):
    """nn.Linear forward with pre-prepared (K, N)-layout weight.

    x:      (M, K) float32
    w_kn:   (Kp, Np) float32 or bfloat16 (from prepare_linear_params)
    bias2d: (1, Np)  float32
    n_out:  logical output width N
    """
    M, K = x.shape
    Kp, Np = w_kn.shape
    assert bias2d.shape == (1, Np)
    assert K <= Kp < K + 128, "w_kn must come from prepare_linear_params"

    compute_dtype = w_kn.dtype
    itemsize = jnp.dtype(compute_dtype).itemsize
    m_align = 8 if itemsize == 4 else (16 if itemsize == 2 else 32)
    x = x.astype(compute_dtype)   # x is small relative to the weight

    auto_tm, auto_tn = tm is None, tn is None
    if tm is None:
        tm = _pick_tile(M, 512, m_align)
    if tn is None:
        tn = _pick_tile(Np, 512, 128)
    if tk is None:
        tk = _pick_tile(Kp, 2048, 128)   # K <= 2048 -> single k step, no RMW

    # Validate (also guards user-supplied overrides).
    assert tn % 128 == 0 and Np % tn == 0, (tn, Np)
    assert tk % 128 == 0 and Kp % tk == 0, (tk, Kp)
    assert tm % m_align == 0, (tm, m_align)

    Mp = _round_up(M, tm)

    # v7x has 2 TensorCores and shards only the "parallel" grid axes: make sure
    # there are >= 2 parallel blocks when the shapes allow it (noise on v5e/v6e).
    if (Mp // tm) * (Np // tn) == 1:
        if auto_tn:
            t = _split_divisor(Np, tn, 128)
            if t is not None:
                tn = t
        if (Mp // tm) * (Np // tn) == 1 and auto_tm:
            t = _split_divisor(Mp, tm, m_align)
            if t is not None:
                tm = t
                Mp = _round_up(M, tm)

    # Only x (the small operand) is ever padded per call; zero-padding is exact
    # for the matmul.
    if Mp != M or Kp != K:
        x = jnp.pad(x, ((0, Mp - M), (0, Kp - K)))

    grid = (Mp // tm, Np // tn, Kp // tk)

    bytes_accessed = (
        Mp * Kp * itemsize                       # x read
        + Kp * Np * itemsize * (Mp // tm)        # weight re-streamed per M block
        + Np * 4                                 # bias
        + Mp * Np * 4                            # output write
    )
    cost = pl.CostEstimate(
        flops=2 * M * n_out * K,
        transcendentals=0,
        bytes_accessed=bytes_accessed,
    )

    # Double-buffered input tiles + bias + output tile, plus headroom.
    vmem_req = (
        2 * (tm * tk + tk * tn) * itemsize
        + 2 * tn * 4
        + 2 * tm * tn * 4
    )
    vmem_limit = int(min(max(vmem_req + (4 << 20), 16 << 20), 48 << 20))

    out = pl.pallas_call(
        _linear_kernel,
        out_shape=jax.ShapeDtypeStruct((Mp, Np), jnp.float32),
        grid_spec=pltpu.PrefetchScalarGridSpec(
            num_scalar_prefetch=0,
            grid=grid,
            in_specs=[
                pl.BlockSpec((tm, tk), lambda i, j, k: (i, k)),   # x tile
                pl.BlockSpec((tk, tn), lambda i, j, k: (k, j)),   # W (K, N) tile
                pl.BlockSpec((1, tn), lambda i, j, k: (0, j)),    # bias (k-invariant)
            ],
            out_specs=pl.BlockSpec((tm, tn), lambda i, j, k: (i, j)),
        ),
        compiler_params=pltpu.CompilerParams(
            dimension_semantics=("parallel", "parallel", "arbitrary"),
            vmem_limit_bytes=vmem_limit,
        ),
        cost_estimate=cost,
    )(x, w_kn, bias2d)

    if (Mp, Np) != (M, n_out):
        out = out[:M, :n_out]
    return out


class PallasMLP:
    """Pallas equivalent of the PyTorch MLP module (a single nn.Linear).

    param_dtype=jnp.bfloat16 stores weight (and streams x) as bf16 with f32
    accumulation — ~2x less HBM weight traffic in the bandwidth-bound regime —
    but relaxes numerics vs. the f32 PyTorch reference, so f32 is the default.
    """

    def __init__(self, weight, bias, *, param_dtype=jnp.float32):
        self.w_kn, self.bias2d, self.n_out = prepare_linear_params(
            weight, bias, param_dtype=param_dtype
        )

    def __call__(self, x):
        return mlp_forward(x, self.w_kn, self.bias2d, self.n_out)


if __name__ == "__main__":
    key = jax.random.PRNGKey(0)

    def make_params(k, input_dim, embed_dim):
        kw, kb = jax.random.split(k)
        bound = 1.0 / (input_dim ** 0.5)
        weight = jax.random.uniform(
            kw, (embed_dim, input_dim), jnp.float32, -bound, bound
        )
        bias = jax.random.uniform(kb, (embed_dim,), jnp.float32, -bound, bound)
        return weight, bias

    def run_case(batch, input_dim, embed_dim, case_key, *, param_dtype, atol, rtol):
        kp, kx = jax.random.split(case_key)
        weight, bias = make_params(kp, input_dim, embed_dim)
        x = jax.random.normal(kx, (batch, input_dim), dtype=jnp.float32)

        mlp = PallasMLP(weight, bias, param_dtype=param_dtype)
        out = jax.block_until_ready(mlp(x))

        ref = x @ weight.T + bias
        assert out.shape == (batch, embed_dim), out.shape
        max_err = float(jnp.max(jnp.abs(out - ref)))
        assert jnp.allclose(out, ref, atol=atol, rtol=rtol), max_err

    k1, k2, k3 = jax.random.split(key, 3)
    # Small shapes consistent with the module: single grid block, exact f32.
    run_case(8, 256, 128, k1, param_dtype=jnp.float32, atol=1e-4, rtol=1e-4)
    # Module-default dims (input_dim=2048, embed_dim=768), small batch, f32
    # exact path: single k step (tk == K), 2 parallel output blocks.
    run_case(96, 2048, 768, k2, param_dtype=jnp.float32, atol=1e-4, rtol=1e-4)
    # Same dims with bf16 weight/x storage + f32 accumulation (the HBM-bound
    # fast path recommended by the perf review); relaxed tolerance vs. f32 ref.
    run_case(96, 2048, 768, k3, param_dtype=jnp.bfloat16, atol=5e-2, rtol=5e-2)

    print("KERNEL_OK")
</pallas_src>

<mosaic_0001>
module attributes {stable_mosaic.version = 11 : i64} {
  func.func @_linear_kernel(%arg0: i32, %arg1: i32, %arg2: i32, %arg3: memref<8x256xf32, #tpu.memory_space<vmem>>, %arg4: memref<256x128xf32, #tpu.memory_space<vmem>>, %arg5: memref<1x128xf32, #tpu.memory_space<vmem>>, %arg6: memref<8x128xf32, #tpu.memory_space<vmem>>) attributes {dimension_semantics = [#tpu.dimension_semantics<parallel>, #tpu.dimension_semantics<parallel>, #tpu.dimension_semantics<arbitrary>], iteration_bounds = array<i64: 1, 1, 1>, scalar_prefetch = 0 : i64, scratch_operands = 0 : i64, tpu.core_type = #tpu.core_type<tc>, window_params = [{transform_indices = @transform_0, window_bounds = array<i64: 8, 256>}, {transform_indices = @transform_1, window_bounds = array<i64: 256, 128>}, {transform_indices = @transform_2, window_bounds = array<i64: 1, 128>}, {transform_indices = @transform_3, window_bounds = array<i64: 8, 128>}]} {
    %c0_i32 = arith.constant 0 : i32
    %0 = arith.cmpi eq, %arg2, %c0_i32 : i32
    %1 = arith.extui %0 : i1 to i32
    %c0_i32_0 = arith.constant 0 : i32
    %2 = arith.cmpi ne, %1, %c0_i32_0 : i32
    scf.if %2 {
      %c0_8 = arith.constant 0 : index
      %c0_9 = arith.constant 0 : index
      %9 = vector.load %arg5[%c0_8, %c0_9] : memref<1x128xf32, #tpu.memory_space<vmem>>, vector<1x128xf32>
      %10 = vector.shape_cast %9 : vector<1x128xf32> to vector<1x128xf32>
      %11 = vector.broadcast %10 : vector<1x128xf32> to vector<8x128xf32>
      %c0_10 = arith.constant 0 : index
      %c0_11 = arith.constant 0 : index
      %12 = vector.load %arg6[%c0_10, %c0_11] : memref<8x128xf32, #tpu.memory_space<vmem>>, vector<8x128xf32>
      tpu.vector_store %arg6[%c0_10, %c0_11], %11 {strides = array<i32>} : memref<8x128xf32, #tpu.memory_space<vmem>>, vector<8x128xf32>,
    } else {
    }
    %c0 = arith.constant 0 : index
    %c0_1 = arith.constant 0 : index
    %3 = vector.load %arg6[%c0, %c0_1] : memref<8x128xf32, #tpu.memory_space<vmem>>, vector<8x128xf32>
    %c0_2 = arith.constant 0 : index
    %c0_3 = arith.constant 0 : index
    %4 = vector.load %arg3[%c0_2, %c0_3] : memref<8x256xf32, #tpu.memory_space<vmem>>, vector<8x256xf32>
    %c0_4 = arith.constant 0 : index
    %c0_5 = arith.constant 0 : index
    %5 = vector.load %arg4[%c0_4, %c0_5] : memref<256x128xf32, #tpu.memory_space<vmem>>, vector<256x128xf32>
    %cst = arith.constant dense<0.000000e+00> : vector<8x128xf32>
    %6 = tpu.matmul %4, %5, %cst {dimension_numbers = #tpu.dot_dimension_numbers<[1], [0], [0], [1], [0, 0, 1, 1], [], []>} : vector<8x256xf32>, vector<256x128xf32>, vector<8x128xf32> -> vector<8x128xf32>
    %7 = arith.addf %3, %6 : vector<8x128xf32>
    %c0_6 = arith.constant 0 : index
    %c0_7 = arith.constant 0 : index
    %8 = vector.load %arg6[%c0_6, %c0_7] : memref<8x128xf32, #tpu.memory_space<vmem>>, vector<8x128xf32>
    tpu.vector_store %arg6[%c0_6, %c0_7], %7 {strides = array<i32>} : memref<8x128xf32, #tpu.memory_space<vmem>>, vector<8x128xf32>,
    return
  }
  func.func @transform_0(%arg0: i32, %arg1: i32, %arg2: i32) -> (i32, i32) {
    %c0_i32 = arith.constant 0 : i32
    return %arg0, %arg2 : i32, i32
  }
  func.func @transform_1(%arg0: i32, %arg1: i32, %arg2: i32) -> (i32, i32) {
    %c0_i32 = arith.constant 0 : i32
    return %arg2, %arg1 : i32, i32
  }
  func.func @transform_2(%arg0: i32, %arg1: i32, %arg2: i32) -> (i32, i32) {
    %c0_i32 = arith.constant 0 : i32
    %c0_i32_0 = arith.constant 0 : i32
    return %c0_i32, %arg1 : i32, i32
  }
  func.func @transform_3(%arg0: i32, %arg1: i32, %arg2: i32) -> (i32, i32) {
    %c0_i32 = arith.constant 0 : i32
    return %arg0, %arg1 : i32, i32
  }
}

</mosaic_0001>

<llo_original>
// kernel: tpu_custom_call.1
$region0: #{tpu_custom_call.1}
  #allocation0 [shape = 'u32[]', space=smem, size = 0x4, offset = 0x4, fixed_abs, tag = 'smem constant byte address 0x4 - core index']
  #allocation1 [shape = 'u32[144,128]{1,0:T(1,128)}', space=vmem, size = 0x12000, scoped, tag = 'internal scratch']
  %s0 = inlined_call_operand.hbm [shape: f32[8,256], index: 0, kind: input, shape index: {}]
  %s1 = inlined_call_operand.hbm [shape: f32[256,128], index: 1, kind: input, shape index: {}]
  %s2 = inlined_call_operand.vmem [shape: f32[1,128], index: 2, kind: input, shape index: {}]
  %s3 = inlined_call_operand.hbm [shape: f32[8,128], index: 3, kind: output, shape index: {}]
  %s4 = sld [smem:[#allocation0]]
  $region34: #{tpu_custom_call.1} parent=0
    _
  %s6 = ssub.s32 1, %s4
  %s7 = scalar_select 0, %s6, %s4
  $region1: #{tpu_custom_call.1} parent=0
    #allocation2 [shape = 'u8[8192]{0}', space=vmem, size = 0x2000, scoped, tag = 'input window, operand 0, single buffered']
    #allocation3 [shape = 's32[1]{0}', space=sflag, size = 0x4, scoped, tag = 'scoped memory for tpu_custom_call.1']
    #allocation4 [shape = 's32[1]{0}', space=sflag, size = 0x4, scoped, tag = 'scoped memory for tpu_custom_call.1']
    #allocation5 [shape = 'u8[131072]{0}', space=vmem, size = 0x20000, scoped, tag = 'input window, operand 1, single buffered']
    #allocation6 [shape = 's32[1]{0}', space=sflag, size = 0x4, scoped, tag = 'scoped memory for tpu_custom_call.1']
    #allocation7 [shape = 'u8[4096]{0}', space=vmem, size = 0x1000, scoped, tag = 'output window, operand 0, single buffered']
    %8 = vsyncpa [#allocation3], 0
    %9 = vsyncpa [#allocation6], 0
    %10 = vsyncpa [#allocation4], 0
    // Predicated region
    $region2: #{tpu_custom_call.1} parent=1 // pred_check
      _
    $region3: #{tpu_custom_call.1} parent=1 // pred_check_branch
      %12 = sbr.rel (0) target = $region5
    $region4: #{tpu_custom_call.1} parent=1 // pred_region
      %s14 = ssub.s32 256, 256
      %15 = vsyncadd [#allocation3], %s14
      %s17 = sshll.u32 [#allocation2], 4
      %s18 = int_to_ptr.vmem [resolvable:$true] %s17
      %20 = dma.hbm_to_vmem [thread:$0]  %s0, 256, %s18, [#allocation3]
    $region5: #{tpu_custom_call.1} parent=1 // pred_fallthru
      _
    // Predicated region
    $region6: #{tpu_custom_call.1} parent=1 // pred_check
      _
    $region7: #{tpu_custom_call.1} parent=1 // pred_check_branch
      %22 = sbr.rel (0) target = $region9
    $region8: #{tpu_custom_call.1} parent=1 // pred_region
      %s24 = ssub.s32 4096, 4096
      %25 = vsyncadd [#allocation6], %s24
      %s26 = sshll.u32 [#allocation5], 4
      %s27 = int_to_ptr.vmem [resolvable:$true] %s26
      %32 = dma.hbm_to_vmem [thread:$0]  %s1, 4096, %s27, [#allocation6], 128, 128, 8
    $region9: #{tpu_custom_call.1} parent=1 // pred_fallthru
      _
    // Predicated region
    $region10: #{tpu_custom_call.1} parent=1 // pred_check
      _
    $region11: #{tpu_custom_call.1} parent=1 // pred_check_branch
      %34 = sbr.rel (0) target = $region13
    $region12: #{tpu_custom_call.1} parent=1 // pred_region
      _
    $region13: #{tpu_custom_call.1} parent=1 // pred_fallthru
      _
    // Predicated region
    $region14: #{tpu_custom_call.1} parent=1 // pred_check
      _
    $region15: #{tpu_custom_call.1} parent=1 // pred_check_branch
      %36 = sbr.rel (0) target = $region17
    $region16: #{tpu_custom_call.1} parent=1 // pred_region
      %37 = dma.done [#allocation3], 256
    $region17: #{tpu_custom_call.1} parent=1 // pred_fallthru
      _
    // Predicated region
    $region18: #{tpu_custom_call.1} parent=1 // pred_check
      _
    $region19: #{tpu_custom_call.1} parent=1 // pred_check_branch
      %39 = sbr.rel (0) target = $region21
    $region20: #{tpu_custom_call.1} parent=1 // pred_region
      %40 = dma.done [#allocation6], 4096
    $region21: #{tpu_custom_call.1} parent=1 // pred_fallthru
      _
    %p41 = scmp.eq.s32.totalorder 0, 0
    // Predicated region
    $region22: #{tpu_custom_call.1} parent=1 // pred_check
      %p42 = pneg %p41
    $region23: #{tpu_custom_call.1} parent=1 // pred_check_branch
      %44 = sbr.rel (%p42) target = $region25
    $region24: #{tpu_custom_call.1} parent=1 // pred_region
      %v45 = vld [vmem:[%s2] sm:$0x1]
      %v47 = vlaneseq
      %v48 = vshrl.u32 %v47, 7
      %v49 = vsub.s32 0, %v48
      %v50 = vrot.slane %v45, %v49
      %52 = vst [vmem:[#allocation7] sm:$0xff] %v50
    $region25: #{tpu_custom_call.1} parent=1 // pred_fallthru
      _
    %v53 = vld [vmem:[#allocation7] sm:$0xff]
    %v54 = vld [vmem:[#allocation2] sm:$0xff]
    %v55 = vld [vmem:[#allocation2 + $0x8] sm:$0xff]
    %v56 = vld [vmem:[#allocation5] sm:$0xff]
    %v57 = vld [vmem:[#allocation5 + $0x8] sm:$0xff]
    %v58 = vld [vmem:[#allocation5 + $0x10] sm:$0xff]
    %v59 = vld [vmem:[#allocation5 + $0x18] sm:$0xff]
    %v60 = vld [vmem:[#allocation5 + $0x20] sm:$0xff]
    %v61 = vld [vmem:[#allocation5 + $0x28] sm:$0xff]
    %v62 = vld [vmem:[#allocation5 + $0x30] sm:$0xff]
    %v63 = vld [vmem:[#allocation5 + $0x38] sm:$0xff]
    %v64 = vld [vmem:[#allocation5 + $0x40] sm:$0xff]
    %v65 = vld [vmem:[#allocation5 + $0x48] sm:$0xff]
    %v66 = vld [vmem:[#allocation5 + $0x50] sm:$0xff]
    %v67 = vld [vmem:[#allocation5 + $0x58] sm:$0xff]
    %v68 = vld [vmem:[#allocation5 + $0x60] sm:$0xff]
    %v69 = vld [vmem:[#allocation5 + $0x68] sm:$0xff]
    %v70 = vld [vmem:[#allocation5 + $0x70] sm:$0xff]
    %v71 = vld [vmem:[#allocation5 + $0x78] sm:$0xff]
    %v72 = vld [vmem:[#allocation5 + $0x80] sm:$0xff]
    %v73 = vld [vmem:[#allocation5 + $0x88] sm:$0xff]
    %v74 = vld [vmem:[#allocation5 + $0x90] sm:$0xff]
    %v75 = vld [vmem:[#allocation5 + $0x98] sm:$0xff]
    %v76 = vld [vmem:[#allocation5 + $0xa0] sm:$0xff]
    %v77 = vld [vmem:[#allocation5 + $0xa8] sm:$0xff]
    %v78 = vld [vmem:[#allocation5 + $0xb0] sm:$0xff]
    %v79 = vld [vmem:[#allocation5 + $0xb8] sm:$0xff]
    %v80 = vld [vmem:[#allocation5 + $0xc0] sm:$0xff]
    %v81 = vld [vmem:[#allocation5 + $0xc8] sm:$0xff]
    %v82 = vld [vmem:[#allocation5 + $0xd0] sm:$0xff]
    %v83 = vld [vmem:[#allocation5 + $0xd8] sm:$0xff]
    %v84 = vld [vmem:[#allocation5 + $0xe0] sm:$0xff]
    %v85 = vld [vmem:[#allocation5 + $0xe8] sm:$0xff]
    %v86 = vld [vmem:[#allocation5 + $0xf0] sm:$0xff]
    %v87 = vld [vmem:[#allocation5 + $0xf8] sm:$0xff]
    %88 = vmatprep.subr.mxu0 0.0
    %89 = vmatpush1.msra.mxu0 %v71
    %90 = vmatprep.subr.mxu0 0.0
    %91 = vmatpush1.msra.mxu0 %v70
    %92 = vmatprep.subr.mxu0 0.0
    %93 = vmatpush1.msra.mxu0 %v69
    %94 = vmatprep.subr.mxu0 0.0
    %95 = vmatpush1.msra.mxu0 %v68
    %96 = vmatprep.subr.mxu0 0.0
    %97 = vmatpush1.msra.mxu0 %v67
    %98 = vmatprep.subr.mxu0 0.0
    %99 = vmatpush1.msra.mxu0 %v66
    %100 = vmatprep.subr.mxu0 0.0
    %101 = vmatpush1.msra.mxu0 %v65
    %102 = vmatprep.subr.mxu0 0.0
    %103 = vmatpush1.msra.mxu0 %v64
    %104 = vmatprep.subr.mxu0 0.0
    %105 = vmatpush1.msra.mxu0 %v63
    %106 = vmatprep.subr.mxu0 0.0
    %107 = vmatpush1.msra.mxu0 %v62
    %108 = vmatprep.subr.mxu0 0.0
    %109 = vmatpush1.msra.mxu0 %v61
    %110 = vmatprep.subr.mxu0 0.0
    %111 = vmatpush1.msra.mxu0 %v60
    %112 = vmatprep.subr.mxu0 0.0
    %113 = vmatpush1.msra.mxu0 %v59
    %114 = vmatprep.subr.mxu0 0.0
    %115 = vmatpush1.msra.mxu0 %v58
    %116 = vmatprep.subr.mxu0 0.0
    %117 = vmatpush1.msra.mxu0 %v57
    %118 = vmatprep.subr.mxu0 0.0
    %119 = vmatpush1.msra.mxu0 %v56
    %120 = vmatprep.subr.mxu0 0.0
    %121 = vmatpush2.msra.mxu0 %v87
    %122 = vmatprep.subr.mxu0 0.0
    %123 = vmatpush2.msra.mxu0 %v86
    %124 = vmatprep.subr.mxu0 0.0
    %125 = vmatpush2.msra.mxu0 %v85
    %126 = vmatprep.subr.mxu0 0.0
    %127 = vmatpush2.msra.mxu0 %v84
    %128 = vmatprep.subr.mxu0 0.0
    %129 = vmatpush2.msra.mxu0 %v83
    %130 = vmatprep.subr.mxu0 0.0
    %131 = vmatpush2.msra.mxu0 %v82
    %132 = vmatprep.subr.mxu0 0.0
    %133 = vmatpush2.msra.mxu0 %v81
    %134 = vmatprep.subr.mxu0 0.0
    %135 = vmatpush2.msra.mxu0 %v80
    %136 = vmatprep.subr.mxu0 0.0
    %137 = vmatpush2.msra.mxu0 %v79
    %138 = vmatprep.subr.mxu0 0.0
    %139 = vmatpush2.msra.mxu0 %v78
    %140 = vmatprep.subr.mxu0 0.0
    %141 = vmatpush2.msra.mxu0 %v77
    %142 = vmatprep.subr.mxu0 0.0
    %143 = vmatpush2.msra.mxu0 %v76
    %144 = vmatprep.subr.mxu0 0.0
    %145 = vmatpush2.msra.mxu0 %v75
    %146 = vmatprep.subr.mxu0 0.0
    %147 = vmatpush2.msra.mxu0 %v74
    %148 = vmatprep.subr.mxu0 0.0
    %149 = vmatpush2.msra.mxu0 %v73
    %150 = vmatprep.subr.mxu0 0.0
    %151 = vmatpush2.msra.mxu0 %v72
    %152 = vmatprep.mubr.f32.mxu0 %v55
    %153 = vmatmul.mubr.f32.gmra.mxu0 %v54
    %v154 = vpop.f32.mrf.mxu0
    %v155 = vadd.f32 0.0, %v154
    %v156 = vpop.f32.mrf.mxu0
    %157 = vdwg.mxu0
    %v158 = vadd.f32 %v53, %v155
    %159 = vst [vmem:[#allocation7] sm:$0xff] %v158
    // Predicated region
    $region26: #{tpu_custom_call.1} parent=1 // pred_check
      _
    $region27: #{tpu_custom_call.1} parent=1 // pred_check_branch
      %161 = sbr.rel (0) target = $region29
    $region28: #{tpu_custom_call.1} parent=1 // pred_region
      %s163 = ssub.s32 128, 128
      %164 = vsyncadd [#allocation4], %s163
      %s166 = sshll.u32 [#allocation7], 4
      %s167 = int_to_ptr.vmem [resolvable:$true] %s166
      %169 = dma.vmem_to_hbm [thread:$0]  %s167, 128, %s3, [#allocation4]
    $region29: #{tpu_custom_call.1} parent=1 // pred_fallthru
      _
    // Predicated region
    $region30: #{tpu_custom_call.1} parent=1 // pred_check
      _
    $region31: #{tpu_custom_call.1} parent=1 // pred_check_branch
      %171 = sbr.rel (0) target = $region33
    $region32: #{tpu_custom_call.1} parent=1 // pred_region
      %172 = dma.done [#allocation4], 128
    $region33: #{tpu_custom_call.1} parent=1 // pred_fallthru
      _
    %173 = vsyncpa [#allocation3], 1
    %174 = vsyncpa [#allocation6], 1
    %175 = vsyncpa [#allocation4], 1

</llo_original>
